<compile_context>
chip_gen: v6e
topology: v6e:2x2x1
jax: 0.10.0
libtpu: 0.0.40
codegen_flags: <defaults>
</compile_context>

<pallas_src>
import math

import jax
import jax.numpy as jnp
from jax.experimental import pallas as pl
from jax.experimental.pallas import tpu as pltpu


def _round_up(x, m):
    return (x + m - 1) // m * m


def _ipow(x, p):
    """x**p for a static integer p >= 1 via repeated multiplies (VPU only)."""
    assert p >= 1
    result = None
    base = x
    while p:
        if p & 1:
            result = base if result is None else result * base
        p >>= 1
        if p:
            base = base * base
    return result


def _vmem_capacity_bytes():
    try:
        return int(pltpu.get_tpu_info().vmem_capacity_bytes)
    except Exception:
        return 64 << 20          # v7x per-TC VMEM; conservative fallback


def _make_kernel(p, compute_dtype):
    def kernel(x_ref, wr_ref, wi_ref, br_ref, bi_ref, scale_ref, o_ref):
        # x_ref:  (tm, D)   activation row tile (cast to compute_dtype for MXU)
        # wr/wi:  (D, tn)   transposed weight column tiles (compute_dtype)
        # br/bi:  (1, tn)   bias-column rank-1 rows (f32, added post-dot)
        # scale:  (1,)      exp(log_scale) in SMEM, applied last (f32)
        x = x_ref[...].astype(compute_dtype)
        zr = jnp.dot(x, wr_ref[...], preferred_element_type=jnp.float32) + br_ref[...]
        zi = jnp.dot(x, wi_ref[...], preferred_element_type=jnp.float32) + bi_ref[...]
        mag = zr * zr + zi * zi                       # |x' @ (Wr + i*Wi)^T|^2
        if p >= 8:
            # long power chain -> otherwise-idle EUP slot (exp/log)
            powed = jnp.exp(jnp.float32(p) * jnp.log(mag))
        else:
            powed = _ipow(mag, p)                     # small static p on the VPU
        o_ref[...] = (powed * scale_ref[0]).astype(o_ref.dtype)
    return kernel


def make_opu_forward(w_real, w_im, log_scale, log_bias, degree, *,
                     compute_dtype=jnp.bfloat16, tm_max=1024, tn_max=512):
    """Build the OPUModulePyTorch forward with weights pre-laid-out.

    w_real, w_im : (O, D+1) float32, PyTorch layout (column D is the bias col)
    log_scale, log_bias : scalar parameters
    degree : static hyperparameter; exponent p = floor(degree / 2)
    Returns forward(data: (N, D) -> (N, O) float32), jitted.
    """
    w_real = jnp.asarray(w_real, jnp.float32)
    w_im = jnp.asarray(w_im, jnp.float32)
    o, d1 = w_real.shape
    d = d1 - 1
    assert w_im.shape == (o, d1)
    assert tn_max % 128 == 0

    scale = jnp.exp(jnp.asarray(log_scale, jnp.float32)).reshape((1,))
    bias = jnp.exp(jnp.asarray(log_bias, jnp.float32)).reshape(())
    p = int(degree // 2)

    # Layout work hoisted out of the per-call path (was an extra O*D HBM pass).
    wr_t = w_real[:, :d].T.astype(compute_dtype)                 # (D, O)
    wi_t = w_im[:, :d].T.astype(compute_dtype)                   # (D, O)
    br = (bias * w_real[:, d]).astype(jnp.float32)[None, :]      # (1, O)
    bi = (bias * w_im[:, d]).astype(jnp.float32)[None, :]        # (1, O)

    vmem_budget = int(_vmem_capacity_bytes() * 0.75)
    w_bytes = jnp.dtype(compute_dtype).itemsize
    kernel = _make_kernel(p, compute_dtype)

    @jax.jit
    def forward(data):
        n, d_in = data.shape
        assert d_in == d
        if p == 0:
            # (r^2 + im^2) ** 0 == 1 everywhere -> output is just the scale.
            return jnp.full((n, o), scale[0], dtype=jnp.float32)

        x_bytes = data.dtype.itemsize

        # ---- column tile (multiple of 128, or all of O) -------------------
        tn = o if o <= tn_max else tn_max
        n_col = pl.cdiv(o, tn)
        resident_w = (n_col == 1)                    # weights fetched only once

        # ---- row tile: largest multiple of 16 fitting the VMEM budget -----
        def vmem_need(tm):
            w_buf = 1 if resident_w else 2
            return (2 * tm * d * x_bytes             # activation tile (dbl-buf)
                    + 2 * w_buf * d * tn * w_bytes   # both weight slabs
                    + 2 * w_buf * tn * 4             # bias rows
                    + 2 * tm * tn * 4)               # f32 output tile (dbl-buf)

        tm = min(tm_max, _round_up(max(n, 1), 16))
        while tm > 16 and vmem_need(tm) > vmem_budget:
            tm = _round_up(tm // 2, 16)
        # Prefer >= 4 row steps when the batch allows: real pipeline overlap,
        # without penalising tiny N with per-step overhead.
        if pl.cdiv(n, tm) < 4 and n >= 4 * 64:
            tm = max(64, _round_up(pl.cdiv(n, 4), 16))
        n_row = pl.cdiv(n, tm)

        def resident_spec(shape):
            # Constant block index along the row axis -> Pallas fetches the
            # block once; single-buffer it when it never changes (halves the
            # resident weight footprint, important for v7x's 64 MiB VMEM).
            idx = lambda i, j: (0, j)
            if resident_w and hasattr(pl, "Buffered"):
                try:
                    return pl.BlockSpec(shape, idx, pipeline_mode=pl.Buffered(1))
                except (TypeError, ValueError):
                    pass
            return pl.BlockSpec(shape, idx)

        vmem_limit = int(max(32 << 20, min(vmem_budget, vmem_need(tm) + (8 << 20))))

        return pl.pallas_call(
            kernel,
            out_shape=jax.ShapeDtypeStruct((n, o), jnp.float32),
            grid=(n_row, n_col),
            in_specs=[
                pl.BlockSpec((tm, d), lambda i, j: (i, 0)),     # activations
                resident_spec((d, tn)),                         # Wr^T tile
                resident_spec((d, tn)),                         # Wi^T tile
                resident_spec((1, tn)),                         # bias row (real)
                resident_spec((1, tn)),                         # bias row (imag)
                pl.BlockSpec(memory_space=pltpu.MemorySpace.SMEM),   # exp(log_scale)
            ],
            out_specs=pl.BlockSpec((tm, tn), lambda i, j: (i, j)),
            compiler_params=pltpu.CompilerParams(
                dimension_semantics=("parallel", "parallel"),
                vmem_limit_bytes=vmem_limit,
            ),
        )(data, wr_t, wi_t, br, bi, scale)

    return forward


if __name__ == "__main__":
    # Small shapes consistent with the module; batch deliberately not a
    # multiple of the row tile so the cdiv / partial-block path is exercised.
    batch = 300
    input_features = 16            # D ; the module projects from D+1 (bias col)
    output_features = 32           # O
    scale_hp, bias_hp, degree_hp = 1.0, 0.0, 2.0

    key = jax.random.PRNGKey(0)
    k_data, k_wr, k_wi = jax.random.split(key, 3)

    w_real = (jnp.sqrt(0.5) *
              jax.random.normal(k_wr, (output_features, input_features + 1),
                                dtype=jnp.float32))
    w_im = (jnp.sqrt(0.5) *
            jax.random.normal(k_wi, (output_features, input_features + 1),
                              dtype=jnp.float32))
    log_scale = jnp.float32(-0.5 * math.log(output_features) + math.log(scale_hp))
    log_bias = jnp.float32(math.log(bias_hp + 1e-09))

    data = jax.random.normal(k_data, (batch, input_features), dtype=jnp.float32)

    # Reference (module semantics, full-precision f32 matmuls).
    p = int(degree_hp // 2)
    bias_col = jnp.full((batch, 1), jnp.exp(log_bias), dtype=jnp.float32)
    x_full = jnp.concatenate([data, bias_col], axis=1)
    proj_r = jnp.matmul(x_full, w_real.T, precision=jax.lax.Precision.HIGHEST)
    proj_i = jnp.matmul(x_full, w_im.T, precision=jax.lax.Precision.HIGHEST)
    ref = (proj_r ** 2 + proj_i ** 2) ** p * jnp.exp(log_scale)

    # f32 compute path.
    fwd_f32 = make_opu_forward(w_real, w_im, log_scale, log_bias, degree_hp,
                               compute_dtype=jnp.float32)
    out_f32 = jax.block_until_ready(fwd_f32(data))
    assert out_f32.shape == (batch, output_features)
    assert jnp.allclose(out_f32, ref, rtol=2e-2, atol=1e-2), \
        float(jnp.max(jnp.abs(out_f32 - ref)))

    # Default perf path: bf16 MXU operands, f32 accumulation + f32 epilogue.
    fwd_bf16 = make_opu_forward(w_real, w_im, log_scale, log_bias, degree_hp)
    out_bf16 = jax.block_until_ready(fwd_bf16(data))
    assert out_bf16.shape == (batch, output_features)
    # bf16 operand quantisation (+ squaring) -> looser tolerance.
    assert jnp.allclose(out_bf16, ref, rtol=5e-2, atol=5e-2), \
        float(jnp.max(jnp.abs(out_bf16 - ref)))

    print("KERNEL_OK")
</pallas_src>

<mosaic_0001>
module attributes {stable_mosaic.version = 11 : i64} {
  func.func @kernel(%arg0: i32, %arg1: i32, %arg2: memref<80x16xf32, #tpu.memory_space<vmem>>, %arg3: memref<16x32xf32, #tpu.memory_space<vmem>>, %arg4: memref<16x32xf32, #tpu.memory_space<vmem>>, %arg5: memref<1x32xf32, #tpu.memory_space<vmem>>, %arg6: memref<1x32xf32, #tpu.memory_space<vmem>>, %arg7: memref<1xf32, #tpu.memory_space<smem>>, %arg8: memref<80x32xf32, #tpu.memory_space<vmem>>) attributes {dimension_semantics = [#tpu.dimension_semantics<parallel>, #tpu.dimension_semantics<parallel>], iteration_bounds = array<i64: 4, 1>, scalar_prefetch = 0 : i64, scratch_operands = 0 : i64, tpu.core_type = #tpu.core_type<tc>, window_params = [{transform_indices = @transform_0, window_bounds = array<i64: 80, 16>}, {pipeline_mode = #tpu.pipeline_mode<synchronous>, transform_indices = @transform_1, window_bounds = array<i64: 16, 32>}, {pipeline_mode = #tpu.pipeline_mode<synchronous>, transform_indices = @transform_2, window_bounds = array<i64: 16, 32>}, {pipeline_mode = #tpu.pipeline_mode<synchronous>, transform_indices = @transform_3, window_bounds = array<i64: 1, 32>}, {pipeline_mode = #tpu.pipeline_mode<synchronous>, transform_indices = @transform_4, window_bounds = array<i64: 1, 32>}, {transform_indices = @transform_5, window_bounds = array<i64: 1>}, {transform_indices = @transform_6, window_bounds = array<i64: 80, 32>}]} {
    %c0 = arith.constant 0 : index
    %c0_0 = arith.constant 0 : index
    %0 = vector.load %arg2[%c0, %c0_0] : memref<80x16xf32, #tpu.memory_space<vmem>>, vector<80x16xf32>
    %c0_1 = arith.constant 0 : index
    %c0_2 = arith.constant 0 : index
    %1 = vector.load %arg3[%c0_1, %c0_2] : memref<16x32xf32, #tpu.memory_space<vmem>>, vector<16x32xf32>
    %cst = arith.constant dense<0.000000e+00> : vector<80x32xf32>
    %2 = tpu.matmul %0, %1, %cst {dimension_numbers = #tpu.dot_dimension_numbers<[1], [0], [0], [1], [0, 0, 1, 1], [], []>} : vector<80x16xf32>, vector<16x32xf32>, vector<80x32xf32> -> vector<80x32xf32>
    %c0_3 = arith.constant 0 : index
    %c0_4 = arith.constant 0 : index
    %3 = vector.load %arg5[%c0_3, %c0_4] : memref<1x32xf32, #tpu.memory_space<vmem>>, vector<1x32xf32>
    %4 = vector.broadcast %3 : vector<1x32xf32> to vector<80x32xf32>
    %5 = arith.addf %2, %4 : vector<80x32xf32>
    %c0_5 = arith.constant 0 : index
    %c0_6 = arith.constant 0 : index
    %6 = vector.load %arg4[%c0_5, %c0_6] : memref<16x32xf32, #tpu.memory_space<vmem>>, vector<16x32xf32>
    %cst_7 = arith.constant dense<0.000000e+00> : vector<80x32xf32>
    %7 = tpu.matmul %0, %6, %cst_7 {dimension_numbers = #tpu.dot_dimension_numbers<[1], [0], [0], [1], [0, 0, 1, 1], [], []>} : vector<80x16xf32>, vector<16x32xf32>, vector<80x32xf32> -> vector<80x32xf32>
    %c0_8 = arith.constant 0 : index
    %c0_9 = arith.constant 0 : index
    %8 = vector.load %arg6[%c0_8, %c0_9] : memref<1x32xf32, #tpu.memory_space<vmem>>, vector<1x32xf32>
    %9 = vector.broadcast %8 : vector<1x32xf32> to vector<80x32xf32>
    %10 = arith.addf %7, %9 : vector<80x32xf32>
    %11 = arith.mulf %5, %5 : vector<80x32xf32>
    %12 = arith.mulf %10, %10 : vector<80x32xf32>
    %13 = arith.addf %11, %12 : vector<80x32xf32>
    %c0_10 = arith.constant 0 : index
    %14 = memref.load %arg7[%c0_10] : memref<1xf32, #tpu.memory_space<smem>>
    %15 = vector.broadcast %14 : f32 to vector<80x32xf32>
    %16 = arith.mulf %13, %15 : vector<80x32xf32>
    %c0_11 = arith.constant 0 : index
    %c0_12 = arith.constant 0 : index
    %17 = vector.load %arg8[%c0_11, %c0_12] : memref<80x32xf32, #tpu.memory_space<vmem>>, vector<80x32xf32>
    tpu.vector_store %arg8[%c0_11, %c0_12], %16 {strides = array<i32>} : memref<80x32xf32, #tpu.memory_space<vmem>>, vector<80x32xf32>,
    return
  }
  func.func @transform_0(%arg0: i32, %arg1: i32) -> (i32, i32) {
    %c0_i32 = arith.constant 0 : i32
    %c0_i32_0 = arith.constant 0 : i32
    return %arg0, %c0_i32 : i32, i32
  }
  func.func @transform_1(%arg0: i32, %arg1: i32) -> (i32, i32) {
    %c0_i32 = arith.constant 0 : i32
    %c0_i32_0 = arith.constant 0 : i32
    return %c0_i32, %arg1 : i32, i32
  }
  func.func @transform_2(%arg0: i32, %arg1: i32) -> (i32, i32) {
    %c0_i32 = arith.constant 0 : i32
    %c0_i32_0 = arith.constant 0 : i32
    return %c0_i32, %arg1 : i32, i32
  }
  func.func @transform_3(%arg0: i32, %arg1: i32) -> (i32, i32) {
    %c0_i32 = arith.constant 0 : i32
    %c0_i32_0 = arith.constant 0 : i32
    return %c0_i32, %arg1 : i32, i32
  }
  func.func @transform_4(%arg0: i32, %arg1: i32) -> (i32, i32) {
    %c0_i32 = arith.constant 0 : i32
    %c0_i32_0 = arith.constant 0 : i32
    return %c0_i32, %arg1 : i32, i32
  }
  func.func @transform_5(%arg0: i32, %arg1: i32) -> i32 {
    %c0_i32 = arith.constant 0 : i32
    %c0_i32_0 = arith.constant 0 : i32
    return %c0_i32 : i32
  }
  func.func @transform_6(%arg0: i32, %arg1: i32) -> (i32, i32) {
    %c0_i32 = arith.constant 0 : i32
    return %arg0, %arg1 : i32, i32
  }
}

</mosaic_0001>

<llo_original>
// kernel: forward.1
$region0: #{forward.1}
  #allocation0 [shape = 'u32[]', space=smem, size = 0x4, offset = 0x4, fixed_abs, tag = 'smem constant byte address 0x4 - core index']
  #allocation1 [shape = 'u32[144,128]{1,0:T(1,128)}', space=vmem, size = 0x12000, scoped, tag = 'internal scratch']
  #allocation2 [shape = 'f32[1]{0:T(128)S(6)}', space=smem, size = 0x200, scoped, tag = 'scoped memory for forward.1']
  %s0 = inlined_call_operand.vmem [shape: f32[300,16], index: 0, kind: input, shape index: {}]
  %s1 = inlined_call_operand.vmem [shape: f32[16,32], index: 1, kind: input, shape index: {}]
  %s2 = inlined_call_operand.vmem [shape: f32[16,32], index: 2, kind: input, shape index: {}]
  %s3 = inlined_call_operand.vmem [shape: f32[1,32], index: 3, kind: input, shape index: {}]
  %s4 = inlined_call_operand.vmem [shape: f32[1,32], index: 4, kind: input, shape index: {}]
  %s5 = inlined_call_operand.<no memory space> [shape: f32[1], index: 5, kind: input, shape index: {}]
  %s6 = inlined_call_operand.vmem [shape: f32[300,32], index: 6, kind: output, shape index: {}]
  %s7 = sld [smem:[#allocation0]]
  $region105: #{forward.1} parent=0
    _
  %s9 = ssub.s32 1, %s7
  %s10 = scalar_select 0, %s9, %s7
  %11 = sst [smem:[#allocation2]] %s5
  $region1: #{forward.1} parent=0
    #allocation3 [shape = 'u8[81920]{0}', space=vmem, size = 0x14000, scoped, tag = 'output window, operand 0']
    loop: start=0, step=1, limit=6
    $region2: #{forward.1} parent=1 // loop_pre_header
      _
    $region3: #{forward.1} parent=1 // loop_header
      %s13 = sphi 0, %s17
      %p14 = scmp.ge.s32.totalorder %s13, 6
      %s20 = sphi 0, %s32
      %s21 = sphi 0, %s28
      %s22 = sphi 0, %s20
      %s23 = sphi 0, %s21
      %s24 = sphi 0, %s22
      %s25 = sphi 0, %s23
      %s35 = sphi 0, %s37
      %s38 = sphi 0, %s35
      %s39 = sphi 0, %s38
      %s55 = sphi 0, %s39
      %s61 = sphi 0, %s63
      %s64 = sphi 0, %s61
      %s65 = sphi 0, %s64
      %s81 = sphi 0, %s65
      %s87 = sphi 0, %s89
      %s90 = sphi 0, %s87
      %s91 = sphi 0, %s90
      %s107 = sphi 0, %s91
      %s113 = sphi 0, %s115
      %s116 = sphi 0, %s113
      %s117 = sphi 0, %s116
      %s133 = sphi 0, %s117
      %s139 = sphi 0, %s141
      %s142 = sphi 0, %s139
      %s143 = sphi 0, %s142
      %s159 = sphi 0, %s143
      %s163 = sphi 0, %s163
      %s165 = sphi 0, %s163
      %s166 = sphi 0, %s165
      %s180 = sphi 0, %s166
      %s188 = sphi 0, %s190
      %s191 = sphi 0, %s188
      %s192 = sphi 0, %s191
      %s208 = sphi 0, %s192
    $region4: #{forward.1} parent=1 // loop_header_branch
      %16 = sbr.rel (%p14) target = $region8
    $region5: #{forward.1} parent=1 // loop_body
      %s18 = ssub.s32 %s13, 1
      %s19 = ssub.s32 %s13, 2
      %s26 = sadd.s32 1, %s21
      %p27 = scmp.ge.s32.totalorder %s26, 1
      %s28 = scalar_select %p27, 0, %s26
      %s29 = sadd.s32 1, %s20
      %s30 = scalar_select %p27, %s29, %s20
      %p31 = scmp.ge.s32.totalorder %s30, 4
      %s32 = scalar_select %p31, 0, %s30
      %s33 = ssub.s32 %s20, %s32
      %p34 = scmp.eq.s32.totalorder %s33, 0
      %s36 = sadd.s32 %s35, 1
      %s37 = scalar_select %p34, %s35, %s36
      %p40 = pneg %p34
      %p41 = scmp.eq.s32.totalorder %s13, 3
      %p42 = por %p40, %p41
      %p43 = scmp.ne.s32.totalorder %s35, %s38
      %p44 = scmp.eq.s32.totalorder %s13, 0
      %p45 = por %p43, %p44
      %p46 = scmp.ne.s32.totalorder %s35, %s38
      %p47 = scmp.eq.s32.totalorder %s18, 3
      %p48 = por %p46, %p47
      %p49 = scmp.ne.s32.totalorder %s38, %s39
      %p50 = scmp.eq.s32.totalorder %s18, 0
      %p51 = por %p49, %p50
      %p52 = scmp.ne.s32.totalorder %s38, %s39
      %p53 = scmp.eq.s32.totalorder %s19, 3
      %p54 = por %p52, %p53
      %p56 = scmp.ne.s32.totalorder %s39, %s55
      %p57 = scmp.eq.s32.totalorder %s19, 0
      %p58 = por %p56, %p57
      %s59 = ssub.s32 %s21, %s28
      %p60 = scmp.eq.s32.totalorder %s59, 0
      %s62 = sadd.s32 %s61, 1
      %s63 = scalar_select %p60, %s61, %s62
      %p66 = pneg %p60
      %p67 = scmp.eq.s32.totalorder %s13, 3
      %p68 = por %p66, %p67
      %p69 = scmp.ne.s32.totalorder %s61, %s64
      %p70 = scmp.eq.s32.totalorder %s13, 0
      %p71 = por %p69, %p70
      %p72 = scmp.ne.s32.totalorder %s61, %s64
      %p73 = scmp.eq.s32.totalorder %s18, 3
      %p74 = por %p72, %p73
      %p75 = scmp.ne.s32.totalorder %s64, %s65
      %p76 = scmp.eq.s32.totalorder %s18, 0
      %p77 = por %p75, %p76
      %p78 = scmp.ne.s32.totalorder %s64, %s65
      %p79 = scmp.eq.s32.totalorder %s19, 3
      %p80 = por %p78, %p79
      %p82 = scmp.ne.s32.totalorder %s65, %s81
      %p83 = scmp.eq.s32.totalorder %s19, 0
      %p84 = por %p82, %p83
      %s85 = ssub.s32 %s21, %s28
      %p86 = scmp.eq.s32.totalorder %s85, 0
      %s88 = sadd.s32 %s87, 1
      %s89 = scalar_select %p86, %s87, %s88
      %p92 = pneg %p86
      %p93 = scmp.eq.s32.totalorder %s13, 3
      %p94 = por %p92, %p93
      %p95 = scmp.ne.s32.totalorder %s87, %s90
      %p96 = scmp.eq.s32.totalorder %s13, 0
      %p97 = por %p95, %p96
      %p98 = scmp.ne.s32.totalorder %s87, %s90
      %p99 = scmp.eq.s32.totalorder %s18, 3
      %p100 = por %p98, %p99
      %p101 = scmp.ne.s32.totalorder %s90, %s91
      %p102 = scmp.eq.s32.totalorder %s18, 0
      %p103 = por %p101, %p102
      %p104 = scmp.ne.s32.totalorder %s90, %s91
      %p105 = scmp.eq.s32.totalorder %s19, 3
      %p106 = por %p104, %p105
      %p108 = scmp.ne.s32.totalorder %s91, %s107
      %p109 = scmp.eq.s32.totalorder %s19, 0
      %p110 = por %p108, %p109
      %s111 = ssub.s32 %s21, %s28
      %p112 = scmp.eq.s32.totalorder %s111, 0
      %s114 = sadd.s32 %s113, 1
      %s115 = scalar_select %p112, %s113, %s114
      %p118 = pneg %p112
      %p119 = scmp.eq.s32.totalorder %s13, 3
      %p120 = por %p118, %p119
      %p121 = scmp.ne.s32.totalorder %s113, %s116
      %p122 = scmp.eq.s32.totalorder %s13, 0
      %p123 = por %p121, %p122
      %p124 = scmp.ne.s32.totalorder %s113, %s116
      %p125 = scmp.eq.s32.totalorder %s18, 3
      %p126 = por %p124, %p125
      %p127 = scmp.ne.s32.totalorder %s116, %s117
      %p128 = scmp.eq.s32.totalorder %s18, 0
      %p129 = por %p127, %p128
      %p130 = scmp.ne.s32.totalorder %s116, %s117
      %p131 = scmp.eq.s32.totalorder %s19, 3
      %p132 = por %p130, %p131
      %p134 = scmp.ne.s32.totalorder %s117, %s133
      %p135 = scmp.eq.s32.totalorder %s19, 0
      %p136 = por %p134, %p135
      %s137 = ssub.s32 %s21, %s28
      %p138 = scmp.eq.s32.totalorder %s137, 0
      %s140 = sadd.s32 %s139, 1
      %s141 = scalar_select %p138, %s139, %s140
      %p144 = pneg %p138
      %p145 = scmp.eq.s32.totalorder %s13, 3
      %p146 = por %p144, %p145
      %p147 = scmp.ne.s32.totalorder %s139, %s142
      %p148 = scmp.eq.s32.totalorder %s13, 0
      %p149 = por %p147, %p148
      %p150 = scmp.ne.s32.totalorder %s139, %s142
      %p151 = scmp.eq.s32.totalorder %s18, 3
      %p152 = por %p150, %p151
      %p153 = scmp.ne.s32.totalorder %s142, %s143
      %p154 = scmp.eq.s32.totalorder %s18, 0
      %p155 = por %p153, %p154
      %p156 = scmp.ne.s32.totalorder %s142, %s143
      %p157 = scmp.eq.s32.totalorder %s19, 3
      %p158 = por %p156, %p157
      %p160 = scmp.ne.s32.totalorder %s143, %s159
      %p161 = scmp.eq.s32.totalorder %s19, 0
      %p162 = por %p160, %p161
      %s164 = sadd.s32 %s163, 1
      %p167 = scmp.eq.s32.totalorder %s13, 3
      %p168 = scmp.ne.s32.totalorder %s163, %s165
      %p169 = scmp.eq.s32.totalorder %s13, 0
      %p170 = por %p168, %p169
      %p171 = scmp.ne.s32.totalorder %s163, %s165
      %p172 = scmp.eq.s32.totalorder %s18, 3
      %p173 = por %p171, %p172
      %p174 = scmp.ne.s32.totalorder %s165, %s166
      %p175 = scmp.eq.s32.totalorder %s18, 0
      %p176 = por %p174, %p175
      %p177 = scmp.ne.s32.totalorder %s165, %s166
      %p178 = scmp.eq.s32.totalorder %s19, 3
      %p179 = por %p177, %p178
      %p181 = scmp.ne.s32.totalorder %s166, %s180
      %p182 = scmp.eq.s32.totalorder %s19, 0
      %p183 = por %p181, %p182
      %s184 = ssub.s32 %s20, %s32
      %s185 = ssub.s32 %s21, %s28
      %s186 = sor.u32 %s184, %s185
      %p187 = scmp.eq.s32.totalorder %s186, 0
      %s189 = sadd.s32 %s188, 1
      %s190 = scalar_select %p187, %s188, %s189
      %p193 = pneg %p187
      %p194 = scmp.eq.s32.totalorder %s13, 3
      %p195 = por %p193, %p194
      %p196 = scmp.ne.s32.totalorder %s188, %s191
      %p197 = scmp.eq.s32.totalorder %s13, 0
      %p198 = por %p196, %p197
      %p199 = scmp.ne.s32.totalorder %s188, %s191
      %p200 = scmp.eq.s32.totalorder %s18, 3
      %p201 = por %p199, %p200
      %p202 = scmp.ne.s32.totalorder %s191, %s192
      %p203 = scmp.eq.s32.totalorder %s18, 0
      %p204 = por %p202, %p203
      %p205 = scmp.ne.s32.totalorder %s191, %s192
      %p206 = scmp.eq.s32.totalorder %s19, 3
      %p207 = por %p205, %p206
      %p209 = scmp.ne.s32.totalorder %s192, %s208
      %p210 = scmp.eq.s32.totalorder %s19, 0
      %p211 = por %p209, %p210
      %p212 = scmp.le.s32.totalorder 1, %s13
      %p213 = scmp.lt.s32.totalorder %s13, 5
      %p214 = pnand %p212, %p213
      %p215 = pneg %p214
      // Predicated region
      $region9: #{forward.1} parent=5 // pred_check
        _
      $region10: #{forward.1} parent=5 // pred_check_branch
        %217 = sbr.rel (%p214) target = $region12
      $region11: #{forward.1} parent=5 // pred_region
        %s218 = ssub.s32 %s13, 1
        // Predicated region
        $region13: #{forward.1} parent=11 // pred_check
          %p219 = pneg %p77
        $region14: #{forward.1} parent=11 // pred_check_branch
          %221 = sbr.rel (%p219) target = $region16
        $region15: #{forward.1} parent=11 // pred_region
          %p222 = scmp.lt.s32.totalorder %s23, 0
          %s223 = scalar_select %p222, %s23, 0
          %s224 = smul.addr %s223, 8
          %s225 = scalar_lea.vmem %s1, %s224
        $region16: #{forward.1} parent=11 // pred_fallthru
          _
        // Predicated region
        $region17: #{forward.1} parent=11 // pred_check
          %p226 = pneg %p103
        $region18: #{forward.1} parent=11 // pred_check_branch
          %228 = sbr.rel (%p226) target = $region20
        $region19: #{forward.1} parent=11 // pred_region
          %p229 = scmp.lt.s32.totalorder %s23, 0
          %s230 = scalar_select %p229, %s23, 0
          %s231 = smul.addr %s230, 8
          %s232 = scalar_lea.vmem %s2, %s231
        $region20: #{forward.1} parent=11 // pred_fallthru
          _
        // Predicated region
        $region21: #{forward.1} parent=11 // pred_check
          %p233 = pneg %p129
        $region22: #{forward.1} parent=11 // pred_check_branch
          %235 = sbr.rel (%p233) target = $region24
        $region23: #{forward.1} parent=11 // pred_region
          %p236 = scmp.lt.s32.totalorder %s23, 0
          %s237 = scalar_select %p236, %s23, 0
          %s238 = scalar_lea.vmem %s3, %s237
        $region24: #{forward.1} parent=11 // pred_fallthru
          _
        // Predicated region
        $region25: #{forward.1} parent=11 // pred_check
          %p239 = pneg %p155
        $region26: #{forward.1} parent=11 // pred_check_branch
          %241 = sbr.rel (%p239) target = $region28
        $region27: #{forward.1} parent=11 // pred_region
          %p242 = scmp.lt.s32.totalorder %s23, 0
          %s243 = scalar_select %p242, %s23, 0
          %s244 = scalar_lea.vmem %s4, %s243
        $region28: #{forward.1} parent=11 // pred_fallthru
          _
        // Predicated region
        $region29: #{forward.1} parent=11 // pred_check
          %p245 = pneg %p176
        $region30: #{forward.1} parent=11 // pred_check_branch
          %247 = sbr.rel (%p245) target = $region32
        $region31: #{forward.1} parent=11 // pred_region
          _
        $region32: #{forward.1} parent=11 // pred_fallthru
          _
      $region12: #{forward.1} parent=5 // pred_fallthru
        _
      %p248 = scmp.lt.s32.totalorder %s13, 4
      // Predicated region
      $region33: #{forward.1} parent=5 // pred_check
        %p249 = pneg %p248
      $region34: #{forward.1} parent=5 // pred_check_branch
        %251 = sbr.rel (%p249) target = $region36
      $region35: #{forward.1} parent=5 // pred_region
        // Predicated region
        $region37: #{forward.1} parent=35 // pred_check
          %p252 = pneg %p45
        $region38: #{forward.1} parent=35 // pred_check_branch
          %254 = sbr.rel (%p252) target = $region40
        $region39: #{forward.1} parent=35 // pred_region
          %s255 = smul.u32 10, %s20
          %s256 = ssub.s32 38, %s255
          %p257 = scmp.lt.s32.totalorder %s256, 10
          %s258 = scalar_select %p257, %s256, 10
          %s259 = smul.u32 128, %s258
          %p260 = scmp.lt.s32.totalorder %s255, 37
          %s261 = scalar_select %p260, %s255, 37
          %s262 = smul.addr %s261, 8
          %s263 = scalar_lea.vmem %s0, %s262
          %s264 = smul.u32 10, %s20
          %s265 = ssub.s32 38, %s264
          %p266 = scmp.lt.s32.totalorder %s265, 10
          %s267 = scalar_select %p266, %s265, 10
          %s268 = smul.u32 128, %s267
        $region40: #{forward.1} parent=35 // pred_fallthru
          _
      $region36: #{forward.1} parent=5 // pred_fallthru
        _
      %p269 = scmp.le.s32.totalorder 1, %s13
      %p270 = scmp.lt.s32.totalorder %s13, 5
      %p271 = pnand %p269, %p270
      %p272 = pneg %p271
      // Predicated region
      $region41: #{forward.1} parent=5 // pred_check
        _
      $region42: #{forward.1} parent=5 // pred_check_branch
        %274 = sbr.rel (%p271) target = $region44
      $region43: #{forward.1} parent=5 // pred_region
        %s275 = ssub.s32 %s13, 1
        %s276 = smul.u32 10, %s22
        %s277 = ssub.s32 38, %s276
        %p278 = scmp.lt.s32.totalorder %s277, 10
        %s279 = scalar_select %p278, %s277, 10
        %s280 = smul.u32 128, %s279
        %p281 = scmp.lt.s32.totalorder %s276, 37
        %s282 = scalar_select %p281, %s276, 37
        %s283 = smul.addr %s282, 8
        %s284 = scalar_lea.vmem %s0, %s283
        %p285 = pneg %p51
        %p286 = pneg %p48
        %p287 = scmp.lt.s32.totalorder %s23, 0
        %s288 = scalar_select %p287, %s23, 0
        %s289 = smul.addr %s288, 8
        %s290 = scalar_lea.vmem %s1, %s289
        %p291 = pneg %p77
        %p292 = pneg %p74
        %p293 = scmp.lt.s32.totalorder %s23, 0
        %s294 = scalar_select %p293, %s23, 0
        %s295 = smul.addr %s294, 8
        %s296 = scalar_lea.vmem %s2, %s295
        %p297 = pneg %p103
        %p298 = pneg %p100
        %p299 = scmp.lt.s32.totalorder %s23, 0
        %s300 = scalar_select %p299, %s23, 0
        %s301 = scalar_lea.vmem %s3, %s300
        %p302 = pneg %p129
        %p303 = pneg %p126
        %p304 = scmp.lt.s32.totalorder %s23, 0
        %s305 = scalar_select %p304, %s23, 0
        %s306 = scalar_lea.vmem %s4, %s305
        %p307 = pneg %p155
        %p308 = pneg %p152
        %p309 = pneg %p176
        %p310 = pneg %p173
        %p311 = pneg %p204
        %p312 = pneg %p201
        %s313 = sand.u32 %s191, 1
        %s314 = sand.u32 %s191, 1
        %s315 = smul.addr %s314, 80
        %s316 = scalar_lea.vmem [#allocation3], %s315
        %s317 = smul.u32 10, %s22
        %s318 = ssub.s32 38, %s317
        %p319 = scmp.lt.s32.totalorder %s318, 10
        %s320 = scalar_select %p319, %s318, 10
        %s321 = smul.u32 128, %s320
        %p322 = scmp.lt.s32.totalorder %s317, 37
        %s323 = scalar_select %p322, %s317, 37
        %s324 = smul.addr %s323, 8
        %s325 = scalar_lea.vmem %s0, %s324
        %s326 = smul.u32 10, %s22
        %s327 = ssub.s32 38, %s326
        %p328 = scmp.lt.s32.totalorder %s327, 10
        %s329 = scalar_select %p328, %s327, 10
        %s330 = smul.u32 128, %s329
        %p331 = scmp.lt.s32.totalorder %s23, 0
        %s332 = scalar_select %p331, %s23, 0
        %s333 = smul.addr %s332, 8
        %s334 = scalar_lea.vmem %s1, %s333
        %p335 = scmp.lt.s32.totalorder %s23, 0
        %s336 = scalar_select %p335, %s23, 0
        %s337 = smul.addr %s336, 8
        %s338 = scalar_lea.vmem %s2, %s337
        %p339 = scmp.lt.s32.totalorder %s23, 0
        %s340 = scalar_select %p339, %s23, 0
        %s341 = scalar_lea.vmem %s3, %s340
        %p342 = scmp.lt.s32.totalorder %s23, 0
        %s343 = scalar_select %p342, %s23, 0
        %s344 = scalar_lea.vmem %s4, %s343
        %s345 = smul.u32 10, %s22
        %s346 = ssub.s32 38, %s345
        %p347 = scmp.lt.s32.totalorder %s346, 10
        %s348 = scalar_select %p347, %s346, 10
        %s349 = smul.u32 128, %s348
        %v350 = vld [vmem:[%s325] sm:$0xff]
        %v351 = vld [vmem:[%s325 + $0x8] sm:$0xff]
        %v352 = vld [vmem:[%s325 + $0x10] sm:$0xff]
        %v353 = vld [vmem:[%s325 + $0x18] sm:$0xff]
        %v354 = vld [vmem:[%s325 + $0x20] sm:$0xff]
        %v355 = vld [vmem:[%s325 + $0x28] sm:$0xff]
        %v356 = vld [vmem:[%s325 + $0x30] sm:$0xff]
        %v357 = vld [vmem:[%s325 + $0x38] sm:$0xff]
        %v358 = vld [vmem:[%s325 + $0x40] sm:$0xff]
        %v359 = vld [vmem:[%s325 + $0x48] sm:$0xff]
        %v360 = vld [vmem:[%s334] sm:$0xff]
        %v361 = vld [vmem:[%s334 + $0x8] sm:$0xff]
        %v362 = vld [vmem:[%s341] sm:$0x1]
        %v364 = vlaneseq
        %v365 = vshrl.u32 %v364, 7
        %v366 = vsub.s32 0, %v365
        %v367 = vrot.slane %v362, %v366
        %vm369 = vcmask 130048
        %v371 = vsel %vm369, %v350, 0
        %v374 = vsel %vm369, %v351, 0
        %v377 = vsel %vm369, %v352, 0
        %v380 = vsel %vm369, %v353, 0
        %v383 = vsel %vm369, %v354, 0
        %v386 = vsel %vm369, %v355, 0
        %v389 = vsel %vm369, %v356, 0
        %v392 = vsel %vm369, %v357, 0
        %v395 = vsel %vm369, %v358, 0
        %v398 = vsel %vm369, %v359, 0
        %400 = vmatprep.subr.mxu0 0.0
        %401 = vmatpush1.msra.mxu0 0.0
        %402 = vmatprep.subr.mxu0 0.0
        %403 = vmatpush1.msra.mxu0 0.0
        %404 = vmatprep.subr.mxu0 0.0
        %405 = vmatpush1.msra.mxu0 0.0
        %406 = vmatprep.subr.mxu0 0.0
        %407 = vmatpush1.msra.mxu0 0.0
        %408 = vmatprep.subr.mxu0 0.0
        %409 = vmatpush1.msra.mxu0 0.0
        %410 = vmatprep.subr.mxu0 0.0
        %411 = vmatpush1.msra.mxu0 0.0
        %412 = vmatprep.subr.mxu0 0.0
        %413 = vmatpush1.msra.mxu0 0.0
        %414 = vmatprep.subr.mxu0 0.0
        %415 = vmatpush1.msra.mxu0 0.0
        %416 = vmatprep.subr.mxu0 0.0
        %417 = vmatpush1.msra.mxu0 0.0
        %418 = vmatprep.subr.mxu0 0.0
        %419 = vmatpush1.msra.mxu0 0.0
        %420 = vmatprep.subr.mxu0 0.0
        %421 = vmatpush1.msra.mxu0 0.0
        %422 = vmatprep.subr.mxu0 0.0
        %423 = vmatpush1.msra.mxu0 0.0
        %424 = vmatprep.subr.mxu0 0.0
        %425 = vmatpush1.msra.mxu0 0.0
        %426 = vmatprep.subr.mxu0 0.0
        %427 = vmatpush1.msra.mxu0 0.0
        %428 = vmatprep.subr.mxu0 0.0
        %429 = vmatpush1.msra.mxu0 %v361
        %430 = vmatprep.subr.mxu0 0.0
        %431 = vmatpush1.msra.mxu0 %v360
        %432 = vmatprep.subr.mxu0 0.0
        %433 = vmatpush2.msra.mxu0 0.0
        %434 = vmatprep.subr.mxu0 0.0
        %435 = vmatpush2.msra.mxu0 0.0
        %436 = vmatprep.subr.mxu0 0.0
        %437 = vmatpush2.msra.mxu0 0.0
        %438 = vmatprep.subr.mxu0 0.0
        %439 = vmatpush2.msra.mxu0 0.0
        %440 = vmatprep.subr.mxu0 0.0
        %441 = vmatpush2.msra.mxu0 0.0
        %442 = vmatprep.subr.mxu0 0.0
        %443 = vmatpush2.msra.mxu0 0.0
        %444 = vmatprep.subr.mxu0 0.0
        %445 = vmatpush2.msra.mxu0 0.0
        %446 = vmatprep.subr.mxu0 0.0
        %447 = vmatpush2.msra.mxu0 0.0
        %448 = vmatprep.subr.mxu0 0.0
        %449 = vmatpush2.msra.mxu0 0.0
        %450 = vmatprep.subr.mxu0 0.0
        %451 = vmatpush2.msra.mxu0 0.0
        %452 = vmatprep.subr.mxu0 0.0
        %453 = vmatpush2.msra.mxu0 0.0
        %454 = vmatprep.subr.mxu0 0.0
        %455 = vmatpush2.msra.mxu0 0.0
        %456 = vmatprep.subr.mxu0 0.0
        %457 = vmatpush2.msra.mxu0 0.0
        %458 = vmatprep.subr.mxu0 0.0
        %459 = vmatpush2.msra.mxu0 0.0
        %460 = vmatprep.subr.mxu0 0.0
        %461 = vmatpush2.msra.mxu0 0.0
        %462 = vmatprep.subr.mxu0 0.0
        %463 = vmatpush2.msra.mxu0 0.0
        %464 = vmatprep.mubr.f32.mxu0 0.0
        %465 = vmatmul.mubr.f32.gmra.mxu0 %v371
        %v466 = vpop.f32.mrf.mxu0
        %v467 = vadd.f32 %v367, %v466
        %v468 = vpop.f32.mrf.mxu0
        %469 = vmatprep.mubr.f32.mxu0 0.0
        %470 = vmatmul.mubr.f32.gmra.mxu0 %v374
        %v471 = vpop.f32.mrf.mxu0
        %v472 = vadd.f32 %v367, %v471
        %v473 = vpop.f32.mrf.mxu0
        %474 = vmatprep.mubr.f32.mxu0 0.0
        %475 = vmatmul.mubr.f32.gmra.mxu0 %v377
        %v476 = vpop.f32.mrf.mxu0
        %v477 = vadd.f32 %v367, %v476
        %v478 = vpop.f32.mrf.mxu0
        %479 = vmatprep.mubr.f32.mxu0 0.0
        %480 = vmatmul.mubr.f32.gmra.mxu0 %v380
        %v481 = vpop.f32.mrf.mxu0
        %v482 = vadd.f32 %v367, %v481
        %v483 = vpop.f32.mrf.mxu0
        %484 = vmatprep.mubr.f32.mxu0 0.0
        %485 = vmatmul.mubr.f32.gmra.mxu0 %v383
        %v486 = vpop.f32.mrf.mxu0
        %v487 = vadd.f32 %v367, %v486
        %v488 = vpop.f32.mrf.mxu0
        %489 = vmatprep.mubr.f32.mxu0 0.0
        %490 = vmatmul.mubr.f32.gmra.mxu0 %v386
        %v491 = vpop.f32.mrf.mxu0
        %v492 = vadd.f32 %v367, %v491
        %v493 = vpop.f32.mrf.mxu0
        %494 = vmatprep.mubr.f32.mxu0 0.0
        %495 = vmatmul.mubr.f32.gmra.mxu0 %v389
        %v496 = vpop.f32.mrf.mxu0
        %v497 = vadd.f32 %v367, %v496
        %v498 = vpop.f32.mrf.mxu0
        %499 = vmatprep.mubr.f32.mxu0 0.0
        %500 = vmatmul.mubr.f32.gmra.mxu0 %v392
        %v501 = vpop.f32.mrf.mxu0
        %v502 = vadd.f32 %v367, %v501
        %v503 = vpop.f32.mrf.mxu0
        %504 = vmatprep.mubr.f32.mxu0 0.0
        %505 = vmatmul.mubr.f32.gmra.mxu0 %v395
        %v506 = vpop.f32.mrf.mxu0
        %v507 = vadd.f32 %v367, %v506
        %v508 = vpop.f32.mrf.mxu0
        %509 = vmatprep.mubr.f32.mxu0 0.0
        %510 = vmatmul.mubr.f32.gmra.mxu0 %v398
        %v511 = vpop.f32.mrf.mxu0
        %v512 = vadd.f32 %v367, %v511
        %v513 = vpop.f32.mrf.mxu0
        %514 = vdwg.mxu0
        %v515 = vld [vmem:[%s338] sm:$0xff]
        %v516 = vld [vmem:[%s338 + $0x8] sm:$0xff]
        %v517 = vld [vmem:[%s344] sm:$0x1]
        %v519 = vlaneseq
        %v520 = vshrl.u32 %v519, 7
        %v521 = vsub.s32 0, %v520
        %v522 = vrot.slane %v517, %v521
        %524 = vmatprep.subr.mxu0 0.0
        %525 = vmatpush1.msra.mxu0 0.0
        %526 = vmatprep.subr.mxu0 0.0
        %527 = vmatpush1.msra.mxu0 0.0
        %528 = vmatprep.subr.mxu0 0.0
        %529 = vmatpush1.msra.mxu0 0.0
        %530 = vmatprep.subr.mxu0 0.0
        %531 = vmatpush1.msra.mxu0 0.0
        %532 = vmatprep.subr.mxu0 0.0
        %533 = vmatpush1.msra.mxu0 0.0
        %534 = vmatprep.subr.mxu0 0.0
        %535 = vmatpush1.msra.mxu0 0.0
        %536 = vmatprep.subr.mxu0 0.0
        %537 = vmatpush1.msra.mxu0 0.0
        %538 = vmatprep.subr.mxu0 0.0
        %539 = vmatpush1.msra.mxu0 0.0
        %540 = vmatprep.subr.mxu0 0.0
        %541 = vmatpush1.msra.mxu0 0.0
        %542 = vmatprep.subr.mxu0 0.0
        %543 = vmatpush1.msra.mxu0 0.0
        %544 = vmatprep.subr.mxu0 0.0
        %545 = vmatpush1.msra.mxu0 0.0
        %546 = vmatprep.subr.mxu0 0.0
        %547 = vmatpush1.msra.mxu0 0.0
        %548 = vmatprep.subr.mxu0 0.0
        %549 = vmatpush1.msra.mxu0 0.0
        %550 = vmatprep.subr.mxu0 0.0
        %551 = vmatpush1.msra.mxu0 0.0
        %552 = vmatprep.subr.mxu0 0.0
        %553 = vmatpush1.msra.mxu0 %v516
        %554 = vmatprep.subr.mxu0 0.0
        %555 = vmatpush1.msra.mxu0 %v515
        %556 = vmatprep.subr.mxu0 0.0
        %557 = vmatpush2.msra.mxu0 0.0
        %558 = vmatprep.subr.mxu0 0.0
        %559 = vmatpush2.msra.mxu0 0.0
        %560 = vmatprep.subr.mxu0 0.0
        %561 = vmatpush2.msra.mxu0 0.0
        %562 = vmatprep.subr.mxu0 0.0
        %563 = vmatpush2.msra.mxu0 0.0
        %564 = vmatprep.subr.mxu0 0.0
        %565 = vmatpush2.msra.mxu0 0.0
        %566 = vmatprep.subr.mxu0 0.0
        %567 = vmatpush2.msra.mxu0 0.0
        %568 = vmatprep.subr.mxu0 0.0
        %569 = vmatpush2.msra.mxu0 0.0
        %570 = vmatprep.subr.mxu0 0.0
        %571 = vmatpush2.msra.mxu0 0.0
        %572 = vmatprep.subr.mxu0 0.0
        %573 = vmatpush2.msra.mxu0 0.0
        %574 = vmatprep.subr.mxu0 0.0
        %575 = vmatpush2.msra.mxu0 0.0
        %576 = vmatprep.subr.mxu0 0.0
        %577 = vmatpush2.msra.mxu0 0.0
        %578 = vmatprep.subr.mxu0 0.0
        %579 = vmatpush2.msra.mxu0 0.0
        %580 = vmatprep.subr.mxu0 0.0
        %581 = vmatpush2.msra.mxu0 0.0
        %582 = vmatprep.subr.mxu0 0.0
        %583 = vmatpush2.msra.mxu0 0.0
        %584 = vmatprep.subr.mxu0 0.0
        %585 = vmatpush2.msra.mxu0 0.0
        %586 = vmatprep.subr.mxu0 0.0
        %587 = vmatpush2.msra.mxu0 0.0
        %588 = vmatprep.mubr.f32.mxu0 0.0
        %589 = vmatmul.mubr.f32.gmra.mxu0 %v371
        %v590 = vpop.f32.mrf.mxu0
        %v591 = vadd.f32 %v522, %v590
        %v592 = vpop.f32.mrf.mxu0
        %593 = vmatprep.mubr.f32.mxu0 0.0
        %594 = vmatmul.mubr.f32.gmra.mxu0 %v374
        %v595 = vpop.f32.mrf.mxu0
        %v596 = vadd.f32 %v522, %v595
        %v597 = vpop.f32.mrf.mxu0
        %598 = vmatprep.mubr.f32.mxu0 0.0
        %599 = vmatmul.mubr.f32.gmra.mxu0 %v377
        %v600 = vpop.f32.mrf.mxu0
        %v601 = vadd.f32 %v522, %v600
        %v602 = vpop.f32.mrf.mxu0
        %603 = vmatprep.mubr.f32.mxu0 0.0
        %604 = vmatmul.mubr.f32.gmra.mxu0 %v380
        %v605 = vpop.f32.mrf.mxu0
        %v606 = vadd.f32 %v522, %v605
        %v607 = vpop.f32.mrf.mxu0
        %608 = vmatprep.mubr.f32.mxu0 0.0
        %609 = vmatmul.mubr.f32.gmra.mxu0 %v383
        %v610 = vpop.f32.mrf.mxu0
        %v611 = vadd.f32 %v522, %v610
        %v612 = vpop.f32.mrf.mxu0
        %613 = vmatprep.mubr.f32.mxu0 0.0
        %614 = vmatmul.mubr.f32.gmra.mxu0 %v386
        %v615 = vpop.f32.mrf.mxu0
        %v616 = vadd.f32 %v522, %v615
        %v617 = vpop.f32.mrf.mxu0
        %618 = vmatprep.mubr.f32.mxu0 0.0
        %619 = vmatmul.mubr.f32.gmra.mxu0 %v389
        %v620 = vpop.f32.mrf.mxu0
        %v621 = vadd.f32 %v522, %v620
        %v622 = vpop.f32.mrf.mxu0
        %623 = vmatprep.mubr.f32.mxu0 0.0
        %624 = vmatmul.mubr.f32.gmra.mxu0 %v392
        %v625 = vpop.f32.mrf.mxu0
        %v626 = vadd.f32 %v522, %v625
        %v627 = vpop.f32.mrf.mxu0
        %628 = vmatprep.mubr.f32.mxu0 0.0
        %629 = vmatmul.mubr.f32.gmra.mxu0 %v395
        %v630 = vpop.f32.mrf.mxu0
        %v631 = vadd.f32 %v522, %v630
        %v632 = vpop.f32.mrf.mxu0
        %633 = vmatprep.mubr.f32.mxu0 0.0
        %634 = vmatmul.mubr.f32.gmra.mxu0 %v398
        %v635 = vpop.f32.mrf.mxu0
        %v636 = vadd.f32 %v522, %v635
        %v637 = vpop.f32.mrf.mxu0
        %638 = vdwg.mxu0
        %v639 = vmul.f32 %v467, %v467
        %v640 = vmul.f32 %v472, %v472
        %v641 = vmul.f32 %v477, %v477
        %v642 = vmul.f32 %v482, %v482
        %v643 = vmul.f32 %v487, %v487
        %v644 = vmul.f32 %v492, %v492
        %v645 = vmul.f32 %v497, %v497
        %v646 = vmul.f32 %v502, %v502
        %v647 = vmul.f32 %v507, %v507
        %v648 = vmul.f32 %v512, %v512
        %v649 = vmul.f32 %v591, %v591
        %v650 = vmul.f32 %v596, %v596
        %v651 = vmul.f32 %v601, %v601
        %v652 = vmul.f32 %v606, %v606
        %v653 = vmul.f32 %v611, %v611
        %v654 = vmul.f32 %v616, %v616
        %v655 = vmul.f32 %v621, %v621
        %v656 = vmul.f32 %v626, %v626
        %v657 = vmul.f32 %v631, %v631
        %v658 = vmul.f32 %v636, %v636
        %v659 = vadd.f32 %v639, %v649
        %v660 = vadd.f32 %v640, %v650
        %v661 = vadd.f32 %v641, %v651
        %v662 = vadd.f32 %v642, %v652
        %v663 = vadd.f32 %v643, %v653
        %v664 = vadd.f32 %v644, %v654
        %v665 = vadd.f32 %v645, %v655
        %v666 = vadd.f32 %v646, %v656
        %v667 = vadd.f32 %v647, %v657
        %v668 = vadd.f32 %v648, %v658
        %s669 = sld [smem:[#allocation2]]
        %v670 = vstv %s669
        %v671 = vmul.f32 %v659, %v670
        %v672 = vmul.f32 %v660, %v670
        %v673 = vmul.f32 %v661, %v670
        %v674 = vmul.f32 %v662, %v670
        %v675 = vmul.f32 %v663, %v670
        %v676 = vmul.f32 %v664, %v670
        %v677 = vmul.f32 %v665, %v670
        %v678 = vmul.f32 %v666, %v670
        %v679 = vmul.f32 %v667, %v670
        %v680 = vmul.f32 %v668, %v670
        %vm681 = vcmask 261120
        %682 = vst.msk [vmem:[%s316] sm:$0xff] %vm681, %v671
        %683 = vst.msk [vmem:[%s316 + $0x8] sm:$0xff] %vm681, %v672
        %684 = vst.msk [vmem:[%s316 + $0x10] sm:$0xff] %vm681, %v673
        %685 = vst.msk [vmem:[%s316 + $0x18] sm:$0xff] %vm681, %v674
        %686 = vst.msk [vmem:[%s316 + $0x20] sm:$0xff] %vm681, %v675
        %687 = vst.msk [vmem:[%s316 + $0x28] sm:$0xff] %vm681, %v676
        %688 = vst.msk [vmem:[%s316 + $0x30] sm:$0xff] %vm681, %v677
        %689 = vst.msk [vmem:[%s316 + $0x38] sm:$0xff] %vm681, %v678
        %690 = vst.msk [vmem:[%s316 + $0x40] sm:$0xff] %vm681, %v679
        %691 = vst.msk [vmem:[%s316 + $0x48] sm:$0xff] %vm681, %v680
        %s692 = sand.u32 %s191, 1
        %s693 = sand.u32 %s191, 1
        %s694 = smul.addr %s693, 80
        %s695 = scalar_lea.vmem [#allocation3], %s694
        // Predicated region
        $region45: #{forward.1} parent=43 // pred_check
          %p696 = pneg %p201
        $region46: #{forward.1} parent=43 // pred_check_branch
          %698 = sbr.rel (%p696) target = $region48
        $region47: #{forward.1} parent=43 // pred_region
          %s699 = smul.u32 10, %s22
          %s700 = ssub.s32 38, %s699
          %p701 = scmp.lt.s32.totalorder %s700, 10
          %s702 = scalar_select %p701, %s700, 10
          %s703 = smul.u32 128, %s702
          %p704 = scmp.ne.s32.totalorder 0, %s703
          %s705 = sadd.s32 %s23, %s699
          %s706 = smul.addr %s705, 8
          %s707 = scalar_lea.vmem %s6, %s706
          // Predicated region
          $region49: #{forward.1} parent=47 // pred_check
            %p708 = pneg %p704
          $region50: #{forward.1} parent=47 // pred_check_branch
            %710 = sbr.rel (%p708) target = $region52
          $region51: #{forward.1} parent=47 // pred_region
            // Predicated region
            $region53: #{forward.1} parent=51 // pred_check
              _
            $region54: #{forward.1} parent=51 // pred_check_branch
              %712 = sbr.rel (0) target = $region56
            $region55: #{forward.1} parent=51 // pred_region
              // Predicated region
              $region75: #{forward.1} parent=55 // pred_check
                _
              $region76: #{forward.1} parent=55 // pred_check_branch
                %781 = sbr.rel (0) target = $region78
              $region77: #{forward.1} parent=55 // pred_region
                %s782 = sdiv.u32.pop %s702, 10
                %s783 = srem.u32.pop %s702, 10
                // While loop
                $region79: #{forward.1} parent=77 // loop_pre_header
                  _
                $region80: #{forward.1} parent=77 // loop_header
                  %s785 = sphi 0, %s787
                  %p786 = scmp.ge.s32.totalorder %s785, %s782
                  %s790 = sphi 0, %s815
                  %s791 = sphi %s695, %s818
                  %s792 = sphi %s707, %s819
                $region81: #{forward.1} parent=77 // loop_header_branch
                  %789 = sbr.rel (%p786) target = $region85
                $region82: #{forward.1} parent=77 // loop_body
                  %v793 = vld [vmem:[%s791] sm:$0xff]
                  %794 = vst [vmem:[%s792] sm:$0xff] %v793
                  %v795 = vld [vmem:[%s791 + $0x8] sm:$0xff]
                  %796 = vst [vmem:[%s792 + $0x8] sm:$0xff] %v795
                  %v797 = vld [vmem:[%s791 + $0x10] sm:$0xff]
                  %798 = vst [vmem:[%s792 + $0x10] sm:$0xff] %v797
                  %v799 = vld [vmem:[%s791 + $0x18] sm:$0xff]
                  %800 = vst [vmem:[%s792 + $0x18] sm:$0xff] %v799
                  %v801 = vld [vmem:[%s791 + $0x20] sm:$0xff]
                  %802 = vst [vmem:[%s792 + $0x20] sm:$0xff] %v801
                  %v803 = vld [vmem:[%s791 + $0x28] sm:$0xff]
                  %804 = vst [vmem:[%s792 + $0x28] sm:$0xff] %v803
                  %v805 = vld [vmem:[%s791 + $0x30] sm:$0xff]
                  %806 = vst [vmem:[%s792 + $0x30] sm:$0xff] %v805
                  %v807 = vld [vmem:[%s791 + $0x38] sm:$0xff]
                  %808 = vst [vmem:[%s792 + $0x38] sm:$0xff] %v807
                  %v809 = vld [vmem:[%s791 + $0x40] sm:$0xff]
                  %810 = vst [vmem:[%s792 + $0x40] sm:$0xff] %v809
                  %v811 = vld [vmem:[%s791 + $0x48] sm:$0xff]
                  %812 = vst [vmem:[%s792 + $0x48] sm:$0xff] %v811
                  %s813 = sadd.s32 1, %s790
                  %p814 = scmp.ge.s32.totalorder %s813, %s782
                  %s815 = scalar_select %p814, 0, %s813
                  %s816 = smul.u32 %s815, 80
                  %s817 = smul.u32 %s815, 80
                  %s818 = scalar_lea.vmem %s695, %s816 [#allocation3]
                  %s819 = scalar_lea.vmem %s707, %s817
                $region83: #{forward.1} parent=77 // loop_footer
                  %s787 = sadd.s32 %s785, 1
                $region84: #{forward.1} parent=77 // loop_footer_branch
                  %784 = sbr.rel target = $region80
                $region85: #{forward.1} parent=77 // loop_exit
                  _
                %s820 = sdiv.u32.pop %s702, 10
                %s821 = srem.u32.pop %s702, 10
                %s822 = smul.u32 %s820, 10
                %s823 = smul.u32 8, %s822
                %s824 = scalar_lea.vmem %s695, %s823 [#allocation3]
                %s825 = smul.u32 8, %s822
                %s826 = scalar_lea.vmem %s707, %s825
                // While loop
                $region86: #{forward.1} parent=77 // loop_pre_header
                  _
                $region87: #{forward.1} parent=77 // loop_header
                  %s828 = sphi 0, %s830
                  %p829 = scmp.ge.s32.totalorder %s828, %s821
                  %s833 = sphi 0, %s840
                  %s834 = sphi %s824, %s843
                  %s835 = sphi %s826, %s844
                $region88: #{forward.1} parent=77 // loop_header_branch
                  %832 = sbr.rel (%p829) target = $region92
                $region89: #{forward.1} parent=77 // loop_body
                  %v836 = vld [vmem:[%s834] sm:$0xff]
                  %837 = vst [vmem:[%s835] sm:$0xff] %v836
                  %s838 = sadd.s32 1, %s833
                  %p839 = scmp.ge.s32.totalorder %s838, %s821
                  %s840 = scalar_select %p839, 0, %s838
                  %s841 = smul.u32 %s840, 8
                  %s842 = smul.u32 %s840, 8
                  %s843 = scalar_lea.vmem %s824, %s841 [#allocation3]
                  %s844 = scalar_lea.vmem %s826, %s842
                $region90: #{forward.1} parent=77 // loop_footer
                  %s830 = sadd.s32 %s828, 1
                $region91: #{forward.1} parent=77 // loop_footer_branch
                  %827 = sbr.rel target = $region87
                $region92: #{forward.1} parent=77 // loop_exit
                  _
              $region78: #{forward.1} parent=55 // pred_fallthru
                _
              // Predicated region
              $region93: #{forward.1} parent=55 // pred_check
                _
              $region94: #{forward.1} parent=55 // pred_check_branch
                %846 = sbr.rel target = $region96
              $region95: #{forward.1} parent=55 // pred_region
                _
              $region96: #{forward.1} parent=55 // pred_fallthru
                _
            $region56: #{forward.1} parent=51 // pred_fallthru
              _
            // Predicated region
            $region57: #{forward.1} parent=51 // pred_check
              _
            $region58: #{forward.1} parent=51 // pred_check_branch
              %714 = sbr.rel target = $region60
            $region59: #{forward.1} parent=51 // pred_region
              %s716 = ssub.s32 256, 1
              %s717 = sdiv.u32.pop %s702, 10
              %s718 = srem.u32.pop %s702, 10
              // While loop
              $region61: #{forward.1} parent=59 // loop_pre_header
                _
              $region62: #{forward.1} parent=59 // loop_header
                %s720 = sphi 0, %s722
                %p721 = scmp.ge.s32.totalorder %s720, %s717
                %s725 = sphi 0, %s750
                %s726 = sphi %s695, %s753
                %s727 = sphi %s707, %s754
              $region63: #{forward.1} parent=59 // loop_header_branch
                %724 = sbr.rel (%p721) target = $region67
              $region64: #{forward.1} parent=59 // loop_body
                %v728 = vld [vmem:[%s726] sm:%s716]
                %729 = vst [vmem:[%s727] sm:%s716] %v728
                %v730 = vld [vmem:[%s726 + $0x8] sm:%s716]
                %731 = vst [vmem:[%s727 + $0x8] sm:%s716] %v730
                %v732 = vld [vmem:[%s726 + $0x10] sm:%s716]
                %733 = vst [vmem:[%s727 + $0x10] sm:%s716] %v732
                %v734 = vld [vmem:[%s726 + $0x18] sm:%s716]
                %735 = vst [vmem:[%s727 + $0x18] sm:%s716] %v734
                %v736 = vld [vmem:[%s726 + $0x20] sm:%s716]
                %737 = vst [vmem:[%s727 + $0x20] sm:%s716] %v736
                %v738 = vld [vmem:[%s726 + $0x28] sm:%s716]
                %739 = vst [vmem:[%s727 + $0x28] sm:%s716] %v738
                %v740 = vld [vmem:[%s726 + $0x30] sm:%s716]
                %741 = vst [vmem:[%s727 + $0x30] sm:%s716] %v740
                %v742 = vld [vmem:[%s726 + $0x38] sm:%s716]
                %743 = vst [vmem:[%s727 + $0x38] sm:%s716] %v742
                %v744 = vld [vmem:[%s726 + $0x40] sm:%s716]
                %745 = vst [vmem:[%s727 + $0x40] sm:%s716] %v744
                %v746 = vld [vmem:[%s726 + $0x48] sm:%s716]
                %747 = vst [vmem:[%s727 + $0x48] sm:%s716] %v746
                %s748 = sadd.s32 1, %s725
                %p749 = scmp.ge.s32.totalorder %s748, %s717
                %s750 = scalar_select %p749, 0, %s748
                %s751 = smul.u32 %s750, 80
                %s752 = smul.u32 %s750, 80
                %s753 = scalar_lea.vmem %s695, %s751 [#allocation3]
                %s754 = scalar_lea.vmem %s707, %s752
              $region65: #{forward.1} parent=59 // loop_footer
                %s722 = sadd.s32 %s720, 1
              $region66: #{forward.1} parent=59 // loop_footer_branch
                %719 = sbr.rel target = $region62
              $region67: #{forward.1} parent=59 // loop_exit
                _
              %s755 = sdiv.u32.pop %s702, 10
              %s756 = srem.u32.pop %s702, 10
              %s757 = smul.u32 %s755, 10
              %s758 = smul.u32 8, %s757
              %s759 = scalar_lea.vmem %s695, %s758 [#allocation3]
              %s760 = smul.u32 8, %s757
              %s761 = scalar_lea.vmem %s707, %s760
              // While loop
              $region68: #{forward.1} parent=59 // loop_pre_header
                _
              $region69: #{forward.1} parent=59 // loop_header
                %s763 = sphi 0, %s765
                %p764 = scmp.ge.s32.totalorder %s763, %s756
                %s768 = sphi 0, %s775
                %s769 = sphi %s759, %s778
                %s770 = sphi %s761, %s779
              $region70: #{forward.1} parent=59 // loop_header_branch
                %767 = sbr.rel (%p764) target = $region74
              $region71: #{forward.1} parent=59 // loop_body
                %v771 = vld [vmem:[%s769] sm:%s716]
                %772 = vst [vmem:[%s770] sm:%s716] %v771
                %s773 = sadd.s32 1, %s768
                %p774 = scmp.ge.s32.totalorder %s773, %s756
                %s775 = scalar_select %p774, 0, %s773
                %s776 = smul.u32 %s775, 8
                %s777 = smul.u32 %s775, 8
                %s778 = scalar_lea.vmem %s759, %s776 [#allocation3]
                %s779 = scalar_lea.vmem %s761, %s777
              $region72: #{forward.1} parent=59 // loop_footer
                %s765 = sadd.s32 %s763, 1
              $region73: #{forward.1} parent=59 // loop_footer_branch
                %762 = sbr.rel target = $region69
              $region74: #{forward.1} parent=59 // loop_exit
                _
            $region60: #{forward.1} parent=51 // pred_fallthru
              _
          $region52: #{forward.1} parent=47 // pred_fallthru
            _
          %847 = vnop
        $region48: #{forward.1} parent=43 // pred_fallthru
          _
      $region44: #{forward.1} parent=5 // pred_fallthru
        _
      %p848 = scmp.le.s32.totalorder 2, %s13
      // Predicated region
      $region97: #{forward.1} parent=5 // pred_check
        %p849 = pneg %p848
      $region98: #{forward.1} parent=5 // pred_check_branch
        %851 = sbr.rel (%p849) target = $region100
      $region99: #{forward.1} parent=5 // pred_region
        %s852 = ssub.s32 %s13, 2
        // Predicated region
        $region101: #{forward.1} parent=99 // pred_check
          %p853 = pneg %p207
        $region102: #{forward.1} parent=99 // pred_check_branch
          %855 = sbr.rel (%p853) target = $region104
        $region103: #{forward.1} parent=99 // pred_region
          %s856 = sand.u32 %s192, 1
          %s857 = sand.u32 %s192, 1
          %s858 = smul.addr %s857, 80
          %s859 = scalar_lea.vmem [#allocation3], %s858
        $region104: #{forward.1} parent=99 // pred_fallthru
          _
      $region100: #{forward.1} parent=5 // pred_fallthru
        _
    $region6: #{forward.1} parent=1 // loop_footer
      %s17 = sadd.s32 1, %s13
    $region7: #{forward.1} parent=1 // loop_footer_branch
      %12 = sbr.rel target = $region3
    $region8: #{forward.1} parent=1 // loop_exit
      _

</llo_original>
